<compile_context>
chip_gen: v7x
topology: tpu7x:2x2x1
jax: 0.10.0
libtpu: 0.0.40
codegen_flags: <defaults>
</compile_context>

<pallas_src>
import functools
import math

import jax
import jax.numpy as jnp
from jax.experimental import pallas as pl
from jax.experimental.pallas import tpu as pltpu


_INV_SQRT2 = 1.0 / math.sqrt(2.0)


def _round_up(x, m):
    return (x + m - 1) // m * m


def _largest_divisor_tile(total, cap):
    """Largest multiple of 128 that divides `total` and is <= cap (>=128)."""
    best = 128
    t = 128
    while t <= min(cap, total):
        if total % t == 0:
            best = t
        t += 128
    return best


def feedforward_kernel(x_ref, w1_ref, b1_ref, w2_ref, b2_ref, o_ref, *,
                       approximate_gelu):
    # x_ref:  (tm, Dp)   bf16 token tile (resident across the h axis)
    # w1_ref: (Dp, th)   bf16 fc1 weight slice for this h-step
    # b1_ref: (1, th)    f32 fc1 bias slice
    # w2_ref: (th, Dop)  bf16 fc2 weight slice for this h-step
    # b2_ref: (1, Dop)   f32 fc2 bias (full)
    # o_ref:  (tm, Dop)  f32 output tile, used directly as the accumulator
    h_idx = pl.program_id(1)

    @pl.when(h_idx == 0)
    def _():
        o_ref[...] = jnp.zeros_like(o_ref)

    # fc1 slice (bf16 x bf16 -> f32 on the MXU), bias + GELU in f32.
    h = jnp.dot(x_ref[...], w1_ref[...], preferred_element_type=jnp.float32)
    h = h + b1_ref[...]
    if approximate_gelu:
        # tanh-approx GELU: runs on the EUP slot, relieves VALU on v6e/v7x.
        h = jax.nn.gelu(h, approximate=True)
    else:
        # PyTorch nn.GELU() default = exact erf formulation.
        h = 0.5 * h * (1.0 + jax.lax.erf(h * _INV_SQRT2))

    # fc2 partial contraction over this h-tile, accumulated in f32 in o_ref
    # (output block index is constant across the h axis -> resident).
    o_ref[...] += jnp.dot(h.astype(w2_ref.dtype), w2_ref[...],
                          preferred_element_type=jnp.float32)

    @pl.when(h_idx == pl.num_programs(1) - 1)
    def _():
        # b2 added exactly once at finalize.
        o_ref[...] = o_ref[...] + b2_ref[...]

    # TODO(synk): training-mode dropout would need pltpu.prng_seed /
    # pltpu.prng_random_bits masking; eval-mode dropout is identity.


def make_feedforward(w1, b1, w2, b2, *, tm=512, th=512, approx_gelu=False,
                     resident_weight_budget_bytes=20 << 20):
    """Prepare (pad + bf16-cast) weights once; return a jitted forward fn.

    w1: (D, H), b1: (H,), w2: (H, Dout), b2: (Dout,). Forward accepts (..., D).
    """
    D, H = w1.shape
    H2, Dout = w2.shape
    assert H2 == H and b1.shape == (H,) and b2.shape == (Dout,)

    # Lane-dense (multiple-of-128) feature dims.
    D_p = _round_up(D, 128)
    H_p = _round_up(H, 128)
    Do_p = _round_up(Dout, 128)

    # Weight pad + cast hoisted out of the per-call path (done once here).
    w1_p = jnp.pad(w1, ((0, D_p - D), (0, H_p - H))).astype(jnp.bfloat16)
    w2_p = jnp.pad(w2, ((0, H_p - H), (0, Do_p - Dout))).astype(jnp.bfloat16)
    b1_p = jnp.pad(b1, (0, H_p - H)).reshape(1, H_p).astype(jnp.float32)
    b2_p = jnp.pad(b2, (0, Do_p - Dout)).reshape(1, Do_p).astype(jnp.float32)

    # Hidden tile: keep weights fully VMEM-resident when small (single h step,
    # constant index_maps -> DMA'd once for all row tiles); otherwise the
    # largest 128-multiple divisor of H_p that is <= th.
    w_bytes = 2 * (D_p * H_p + H_p * Do_p)          # padded bf16 weights
    if 2 * w_bytes <= resident_weight_budget_bytes:  # 2x: double buffering
        th_eff = H_p
    else:
        th_eff = _largest_divisor_tile(H_p, max(th, 128))

    kernel = functools.partial(feedforward_kernel,
                               approximate_gelu=approx_gelu)

    @jax.jit
    def fwd(x):
        orig_shape = x.shape
        assert orig_shape[-1] == D, "last dim of x must equal fc1 in_features"
        x2d = x.reshape(-1, D)
        M = x2d.shape[0]

        # Row tile: multiple of 16 (dense bf16 sublane packing); when M allows,
        # ensure >=2 row tiles so both v7x TensorCores get work.
        tm_eff = min(tm, _round_up(M, 16))
        if M >= 32 and _round_up(M, tm_eff) // tm_eff < 2:
            tm_eff = _round_up((M + 1) // 2, 16)
        M_p = _round_up(M, tm_eff)

        x_p = jnp.pad(x2d, ((0, M_p - M), (0, D_p - D))).astype(jnp.bfloat16)

        grid = (M_p // tm_eff, H_p // th_eff)

        # Scoped-VMEM budget: double-buffered tiles + headroom (clamped).
        est = 2 * (tm_eff * D_p * 2          # x tile (bf16)
                   + D_p * th_eff * 2        # W1 slice (bf16)
                   + 8 * th_eff * 4          # b1 slice (f32, sublane-padded)
                   + th_eff * Do_p * 2       # W2 slice (bf16)
                   + 8 * Do_p * 4            # b2 (f32, sublane-padded)
                   + tm_eff * Do_p * 4)      # f32 output / accumulator tile
        vmem_limit = int(min(max(est + (8 << 20), 32 << 20), 100 << 20))

        out_p = pl.pallas_call(
            kernel,
            out_shape=jax.ShapeDtypeStruct((M_p, Do_p), jnp.float32),
            grid_spec=pltpu.PrefetchScalarGridSpec(
                num_scalar_prefetch=0,
                grid=grid,
                in_specs=[
                    pl.BlockSpec((tm_eff, D_p), lambda i, h: (i, 0)),    # x
                    pl.BlockSpec((D_p, th_eff), lambda i, h: (0, h)),    # W1
                    pl.BlockSpec((1, th_eff), lambda i, h: (0, h)),      # b1
                    pl.BlockSpec((th_eff, Do_p), lambda i, h: (h, 0)),   # W2
                    pl.BlockSpec((1, Do_p), lambda i, h: (0, 0)),        # b2
                ],
                out_specs=pl.BlockSpec((tm_eff, Do_p), lambda i, h: (i, 0)),
            ),
            compiler_params=pltpu.CompilerParams(
                dimension_semantics=("parallel", "arbitrary"),
                vmem_limit_bytes=vmem_limit),
        )(x_p, w1_p, b1_p, w2_p, b2_p)

        out = out_p[:M, :Dout].astype(x.dtype)
        return out.reshape(*orig_shape[:-1], Dout)

    return fwd


def feedforward_ref(x, w1, b1, w2, b2):
    h = x @ w1 + b1
    h = 0.5 * h * (1.0 + jax.lax.erf(h / jnp.sqrt(2.0)))
    return h @ w2 + b2


if __name__ == "__main__":
    # Module config (synthetic, deterministic init): dim=32, hidden_dim=64,
    # out_dim defaults to dim, dropout=0.1 (identity in eval).
    batch, seq, dim, hidden = 2, 8, 32, 64
    out_dim = dim

    key = jax.random.PRNGKey(0)
    kx, k1, kb1, k2, kb2 = jax.random.split(key, 5)

    # Input as PyTorch would see it: (batch, seq, dim).
    x = jax.random.normal(kx, (batch, seq, dim), dtype=jnp.float32)

    # Deterministic "trunc_normal_-like" init (plain normal * 0.02) + small
    # bias, stored pre-transposed: W1 (dim, hidden), W2 (hidden, out_dim).
    w1 = 0.02 * jax.random.normal(k1, (dim, hidden), dtype=jnp.float32)
    b1 = 0.01 * jax.random.normal(kb1, (hidden,), dtype=jnp.float32)
    w2 = 0.02 * jax.random.normal(k2, (hidden, out_dim), dtype=jnp.float32)
    b2 = 0.01 * jax.random.normal(kb2, (out_dim,), dtype=jnp.float32)

    ffn = make_feedforward(w1, b1, w2, b2)   # weights padded/cast once here
    out = ffn(x)
    jax.block_until_ready(out)

    ref = feedforward_ref(x.reshape(-1, dim), w1, b1, w2, b2)
    ref = ref.reshape(batch, seq, out_dim)
    # bf16 matmul inputs with f32 accumulation -> tolerance accordingly.
    assert jnp.allclose(out, ref, atol=5e-3, rtol=5e-2), "mismatch vs reference"

    print("KERNEL_OK")
</pallas_src>

<mosaic_0001>
module attributes {stable_mosaic.version = 11 : i64} {
  func.func @feedforward_kernel(%arg0: i32, %arg1: i32, %arg2: memref<16x128xbf16, #tpu.memory_space<vmem>>, %arg3: memref<128x128xbf16, #tpu.memory_space<vmem>>, %arg4: memref<1x128xf32, #tpu.memory_space<vmem>>, %arg5: memref<128x128xbf16, #tpu.memory_space<vmem>>, %arg6: memref<1x128xf32, #tpu.memory_space<vmem>>, %arg7: memref<16x128xf32, #tpu.memory_space<vmem>>) attributes {dimension_semantics = [#tpu.dimension_semantics<parallel>, #tpu.dimension_semantics<arbitrary>], iteration_bounds = array<i64: 1, 1>, scalar_prefetch = 0 : i64, scratch_operands = 0 : i64, tpu.core_type = #tpu.core_type<tc>, window_params = [{transform_indices = @transform_0, window_bounds = array<i64: 16, 128>}, {transform_indices = @transform_1, window_bounds = array<i64: 128, 128>}, {transform_indices = @transform_2, window_bounds = array<i64: 1, 128>}, {transform_indices = @transform_3, window_bounds = array<i64: 128, 128>}, {pipeline_mode = #tpu.pipeline_mode<synchronous>, transform_indices = @transform_4, window_bounds = array<i64: 1, 128>}, {transform_indices = @transform_5, window_bounds = array<i64: 16, 128>}]} {
    %c0_i32 = arith.constant 0 : i32
    %0 = arith.cmpi eq, %arg1, %c0_i32 : i32
    %1 = arith.extui %0 : i1 to i32
    %c0_i32_0 = arith.constant 0 : i32
    %2 = arith.cmpi ne, %1, %c0_i32_0 : i32
    scf.if %2 {
      %cst_18 = arith.constant 0.000000e+00 : f32
      %26 = vector.broadcast %cst_18 : f32 to vector<16x128xf32>
      %c0_19 = arith.constant 0 : index
      %c0_20 = arith.constant 0 : index
      %27 = vector.load %arg7[%c0_19, %c0_20] : memref<16x128xf32, #tpu.memory_space<vmem>>, vector<16x128xf32>
      tpu.vector_store %arg7[%c0_19, %c0_20], %26 {strides = array<i32>} : memref<16x128xf32, #tpu.memory_space<vmem>>, vector<16x128xf32>,
    } else {
    }
    %c0 = arith.constant 0 : index
    %c0_1 = arith.constant 0 : index
    %3 = vector.load %arg2[%c0, %c0_1] : memref<16x128xbf16, #tpu.memory_space<vmem>>, vector<16x128xbf16>
    %c0_2 = arith.constant 0 : index
    %c0_3 = arith.constant 0 : index
    %4 = vector.load %arg3[%c0_2, %c0_3] : memref<128x128xbf16, #tpu.memory_space<vmem>>, vector<128x128xbf16>
    %cst = arith.constant dense<0.000000e+00> : vector<16x128xf32>
    %5 = tpu.matmul %3, %4, %cst {dimension_numbers = #tpu.dot_dimension_numbers<[1], [0], [0], [1], [0, 0, 1, 1], [], []>} : vector<16x128xbf16>, vector<128x128xbf16>, vector<16x128xf32> -> vector<16x128xf32>
    %c0_4 = arith.constant 0 : index
    %c0_5 = arith.constant 0 : index
    %6 = vector.load %arg4[%c0_4, %c0_5] : memref<1x128xf32, #tpu.memory_space<vmem>>, vector<1x128xf32>
    %7 = vector.broadcast %6 : vector<1x128xf32> to vector<16x128xf32>
    %8 = arith.addf %5, %7 : vector<16x128xf32>
    %cst_6 = arith.constant 5.000000e-01 : f32
    %9 = vector.broadcast %cst_6 : f32 to vector<16x128xf32>
    %10 = arith.mulf %9, %8 : vector<16x128xf32>
    %cst_7 = arith.constant 0.707106769 : f32
    %11 = vector.broadcast %cst_7 : f32 to vector<16x128xf32>
    %12 = arith.mulf %8, %11 : vector<16x128xf32>
    %13 = math.erf %12 : vector<16x128xf32>
    %cst_8 = arith.constant 1.000000e+00 : f32
    %14 = vector.broadcast %cst_8 : f32 to vector<16x128xf32>
    %15 = arith.addf %14, %13 : vector<16x128xf32>
    %16 = arith.mulf %10, %15 : vector<16x128xf32>
    %c0_9 = arith.constant 0 : index
    %c0_10 = arith.constant 0 : index
    %17 = vector.load %arg7[%c0_9, %c0_10] : memref<16x128xf32, #tpu.memory_space<vmem>>, vector<16x128xf32>
    %18 = arith.truncf %16 : vector<16x128xf32> to vector<16x128xbf16>
    %c0_11 = arith.constant 0 : index
    %c0_12 = arith.constant 0 : index
    %19 = vector.load %arg5[%c0_11, %c0_12] : memref<128x128xbf16, #tpu.memory_space<vmem>>, vector<128x128xbf16>
    %cst_13 = arith.constant dense<0.000000e+00> : vector<16x128xf32>
    %20 = tpu.matmul %18, %19, %cst_13 {dimension_numbers = #tpu.dot_dimension_numbers<[1], [0], [0], [1], [0, 0, 1, 1], [], []>} : vector<16x128xbf16>, vector<128x128xbf16>, vector<16x128xf32> -> vector<16x128xf32>
    %21 = arith.addf %17, %20 : vector<16x128xf32>
    %c0_14 = arith.constant 0 : index
    %c0_15 = arith.constant 0 : index
    %22 = vector.load %arg7[%c0_14, %c0_15] : memref<16x128xf32, #tpu.memory_space<vmem>>, vector<16x128xf32>
    tpu.vector_store %arg7[%c0_14, %c0_15], %21 {strides = array<i32>} : memref<16x128xf32, #tpu.memory_space<vmem>>, vector<16x128xf32>,
    %c0_i32_16 = arith.constant 0 : i32
    %23 = arith.cmpi eq, %arg1, %c0_i32_16 : i32
    %24 = arith.extui %23 : i1 to i32
    %c0_i32_17 = arith.constant 0 : i32
    %25 = arith.cmpi ne, %24, %c0_i32_17 : i32
    scf.if %25 {
      %c0_18 = arith.constant 0 : index
      %c0_19 = arith.constant 0 : index
      %26 = vector.load %arg7[%c0_18, %c0_19] : memref<16x128xf32, #tpu.memory_space<vmem>>, vector<16x128xf32>
      %c0_20 = arith.constant 0 : index
      %c0_21 = arith.constant 0 : index
      %27 = vector.load %arg6[%c0_20, %c0_21] : memref<1x128xf32, #tpu.memory_space<vmem>>, vector<1x128xf32>
      %28 = vector.broadcast %27 : vector<1x128xf32> to vector<16x128xf32>
      %29 = arith.addf %26, %28 : vector<16x128xf32>
      %c0_22 = arith.constant 0 : index
      %c0_23 = arith.constant 0 : index
      %30 = vector.load %arg7[%c0_22, %c0_23] : memref<16x128xf32, #tpu.memory_space<vmem>>, vector<16x128xf32>
      tpu.vector_store %arg7[%c0_22, %c0_23], %29 {strides = array<i32>} : memref<16x128xf32, #tpu.memory_space<vmem>>, vector<16x128xf32>,
    } else {
    }
    return
  }
  func.func @transform_0(%arg0: i32, %arg1: i32) -> (i32, i32) {
    %c0_i32 = arith.constant 0 : i32
    %c0_i32_0 = arith.constant 0 : i32
    return %arg0, %c0_i32 : i32, i32
  }
  func.func @transform_1(%arg0: i32, %arg1: i32) -> (i32, i32) {
    %c0_i32 = arith.constant 0 : i32
    %c0_i32_0 = arith.constant 0 : i32
    return %c0_i32, %arg1 : i32, i32
  }
  func.func @transform_2(%arg0: i32, %arg1: i32) -> (i32, i32) {
    %c0_i32 = arith.constant 0 : i32
    %c0_i32_0 = arith.constant 0 : i32
    return %c0_i32, %arg1 : i32, i32
  }
  func.func @transform_3(%arg0: i32, %arg1: i32) -> (i32, i32) {
    %c0_i32 = arith.constant 0 : i32
    %c0_i32_0 = arith.constant 0 : i32
    return %arg1, %c0_i32 : i32, i32
  }
  func.func @transform_4(%arg0: i32, %arg1: i32) -> (i32, i32) {
    %c0_i32 = arith.constant 0 : i32
    %c0_i32_0 = arith.constant 0 : i32
    %c0_i32_1 = arith.constant 0 : i32
    return %c0_i32, %c0_i32_0 : i32, i32
  }
  func.func @transform_5(%arg0: i32, %arg1: i32) -> (i32, i32) {
    %c0_i32 = arith.constant 0 : i32
    %c0_i32_0 = arith.constant 0 : i32
    return %arg0, %c0_i32 : i32, i32
  }
}

</mosaic_0001>

<llo_original>
// kernel: fwd.1
$region0: #{fwd.1}
  #allocation0 [shape = 'u32[]', space=smem, size = 0x4, offset = 0x4, fixed_abs, tag = 'smem constant byte address 0x4 - core index']
  #allocation1 [shape = 'u32[144,128]{1,0:T(1,128)}', space=vmem, size = 0x12000, scoped, tag = 'internal scratch']
  %s0 = inlined_call_operand.vmem [shape: bf16[16,128], index: 0, kind: input, shape index: {}]
  %s1 = inlined_call_operand.hbm [shape: bf16[128,128], index: 1, kind: input, shape index: {}]
  %s2 = inlined_call_operand.vmem [shape: f32[1,128], index: 2, kind: input, shape index: {}]
  %s3 = inlined_call_operand.vmem [shape: bf16[128,128], index: 3, kind: input, shape index: {}]
  %s4 = inlined_call_operand.vmem [shape: f32[1,128], index: 4, kind: input, shape index: {}]
  %s5 = inlined_call_operand.vmem [shape: f32[16,128], index: 5, kind: output, shape index: {}]
  %s6 = sld [smem:[#allocation0]]
  $region42: #{fwd.1} parent=0
    _
  %s8 = ssub.s32 1, %s6
  %s9 = scalar_select 0, %s8, %s6
  $region1: #{fwd.1} parent=0
    #allocation2 [shape = 'u8[32768]{0}', space=vmem, size = 0x8000, scoped, tag = 'input window, operand 1, single buffered']
    #allocation3 [shape = 's32[1]{0}', space=sflag, size = 0x4, scoped, tag = 'scoped memory for fwd.1']
    %10 = vsyncpa [#allocation3], 0
    // Predicated region
    $region2: #{fwd.1} parent=1 // pred_check
      _
    $region3: #{fwd.1} parent=1 // pred_check_branch
      %12 = sbr.rel (0) target = $region5
    $region4: #{fwd.1} parent=1 // pred_region
      _
    $region5: #{fwd.1} parent=1 // pred_fallthru
      _
    // Predicated region
    $region6: #{fwd.1} parent=1 // pred_check
      _
    $region7: #{fwd.1} parent=1 // pred_check_branch
      %14 = sbr.rel (0) target = $region9
    $region8: #{fwd.1} parent=1 // pred_region
      %s16 = ssub.s32 1024, 1024
      %17 = vsyncadd [#allocation3], %s16
      %s18 = sshll.u32 [#allocation2], 4
      %s19 = int_to_ptr.vmem [resolvable:$true] %s18
      %24 = dma.hbm_to_vmem [thread:$0]  %s1, 1024, %s19, [#allocation3], 64, 64, 4
    $region9: #{fwd.1} parent=1 // pred_fallthru
      _
    // Predicated region
    $region10: #{fwd.1} parent=1 // pred_check
      _
    $region11: #{fwd.1} parent=1 // pred_check_branch
      %26 = sbr.rel (0) target = $region13
    $region12: #{fwd.1} parent=1 // pred_region
      _
    $region13: #{fwd.1} parent=1 // pred_fallthru
      _
    // Predicated region
    $region14: #{fwd.1} parent=1 // pred_check
      _
    $region15: #{fwd.1} parent=1 // pred_check_branch
      %28 = sbr.rel (0) target = $region17
    $region16: #{fwd.1} parent=1 // pred_region
      _
    $region17: #{fwd.1} parent=1 // pred_fallthru
      _
    // Predicated region
    $region18: #{fwd.1} parent=1 // pred_check
      _
    $region19: #{fwd.1} parent=1 // pred_check_branch
      %30 = sbr.rel (0) target = $region21
    $region20: #{fwd.1} parent=1 // pred_region
      _
    $region21: #{fwd.1} parent=1 // pred_fallthru
      _
    // Predicated region
    $region22: #{fwd.1} parent=1 // pred_check
      _
    $region23: #{fwd.1} parent=1 // pred_check_branch
      %32 = sbr.rel (0) target = $region25
    $region24: #{fwd.1} parent=1 // pred_region
      %33 = dma.done [#allocation3], 1024
    $region25: #{fwd.1} parent=1 // pred_fallthru
      _
    %p35 = scmp.eq.s32.totalorder 0, 0
    // Predicated region
    $region26: #{fwd.1} parent=1 // pred_check
      %p36 = pneg %p35
    $region27: #{fwd.1} parent=1 // pred_check_branch
      %38 = sbr.rel (%p36) target = $region29
    $region28: #{fwd.1} parent=1 // pred_region
      %39 = vst [vmem:[%s5] sm:$0xff] 0.0
      %40 = vst [vmem:[%s5 + $0x8] sm:$0xff] 0.0
    $region29: #{fwd.1} parent=1 // pred_fallthru
      _
    %v41 = vld [vmem:[%s0] sm:$0xf]
    %v42 = vld [vmem:[%s0 + $0x4] sm:$0xf]
    %v43 = vld [vmem:[#allocation2] sm:$0xf]
    %v44 = vld [vmem:[#allocation2 + $0x4] sm:$0xf]
    %v45 = vld [vmem:[#allocation2 + $0x8] sm:$0xf]
    %v46 = vld [vmem:[#allocation2 + $0xc] sm:$0xf]
    %v47 = vld [vmem:[#allocation2 + $0x10] sm:$0xf]
    %v48 = vld [vmem:[#allocation2 + $0x14] sm:$0xf]
    %v49 = vld [vmem:[#allocation2 + $0x18] sm:$0xf]
    %v50 = vld [vmem:[#allocation2 + $0x1c] sm:$0xf]
    %v51 = vld [vmem:[#allocation2 + $0x20] sm:$0xf]
    %v52 = vld [vmem:[#allocation2 + $0x24] sm:$0xf]
    %v53 = vld [vmem:[#allocation2 + $0x28] sm:$0xf]
    %v54 = vld [vmem:[#allocation2 + $0x2c] sm:$0xf]
    %v55 = vld [vmem:[#allocation2 + $0x30] sm:$0xf]
    %v56 = vld [vmem:[#allocation2 + $0x34] sm:$0xf]
    %v57 = vld [vmem:[#allocation2 + $0x38] sm:$0xf]
    %v58 = vld [vmem:[#allocation2 + $0x3c] sm:$0xf]
    %v59 = vld [vmem:[%s2] sm:$0x1]
    %v61 = vlaneseq
    %v62 = vshrl.u32 %v61, 7
    %v63 = vsub.s32 0, %v62
    %v64 = vrot.slane %v59, %v63
    %v68 = vunpack.c.l.b16 %v41
    %v69 = vunpack.c.l.b16 %v42
    %v70 = vpack.c.b16 %v69, %v68
    %v88 = vunpack.c.l.b16 %v43
    %v89 = vunpack.c.l.b16 %v44
    %v90 = vunpack.c.l.b16 %v45
    %v91 = vunpack.c.l.b16 %v46
    %v92 = vunpack.c.l.b16 %v47
    %v93 = vunpack.c.l.b16 %v48
    %v94 = vunpack.c.l.b16 %v49
    %v95 = vunpack.c.l.b16 %v50
    %v96 = vunpack.c.l.b16 %v51
    %v97 = vunpack.c.l.b16 %v52
    %v98 = vunpack.c.l.b16 %v53
    %v99 = vunpack.c.l.b16 %v54
    %v100 = vunpack.c.l.b16 %v55
    %v101 = vunpack.c.l.b16 %v56
    %v102 = vunpack.c.l.b16 %v57
    %v103 = vunpack.c.l.b16 %v58
    %v104 = vpack.c.b16 %v89, %v88
    %v105 = vpack.c.b16 %v91, %v90
    %v106 = vpack.c.b16 %v93, %v92
    %v107 = vpack.c.b16 %v95, %v94
    %v108 = vpack.c.b16 %v97, %v96
    %v109 = vpack.c.b16 %v99, %v98
    %v110 = vpack.c.b16 %v101, %v100
    %v111 = vpack.c.b16 %v103, %v102
    %120 = vmatprep.subr.bf16.mxu0 0
    %121 = vmatpush1.bf16.msra.mxu0 %v104
    %122 = vmatprep.subr.bf16.mxu0 0
    %123 = vmatpush1.bf16.msra.mxu0 %v105
    %124 = vmatprep.subr.bf16.mxu0 0
    %125 = vmatpush1.bf16.msra.mxu0 %v106
    %126 = vmatprep.subr.bf16.mxu0 0
    %127 = vmatpush1.bf16.msra.mxu0 %v107
    %128 = vmatprep.subr.bf16.mxu0 0
    %129 = vmatpush1.bf16.msra.mxu0 %v108
    %130 = vmatprep.subr.bf16.mxu0 0
    %131 = vmatpush1.bf16.msra.mxu0 %v109
    %132 = vmatprep.subr.bf16.mxu0 0
    %133 = vmatpush1.bf16.msra.mxu0 %v110
    %134 = vmatprep.subr.bf16.mxu0 0
    %135 = vmatpush1.bf16.msra.mxu0 %v111
    %136 = vmatprep.subr.bf16.mxu0 0
    %137 = vmatpush1.bf16.msra.mxu0 0
    %138 = vmatprep.subr.bf16.mxu0 0
    %139 = vmatpush1.bf16.msra.mxu0 0
    %140 = vmatprep.subr.bf16.mxu0 0
    %141 = vmatpush1.bf16.msra.mxu0 0
    %142 = vmatprep.subr.bf16.mxu0 0
    %143 = vmatpush1.bf16.msra.mxu0 0
    %144 = vmatprep.subr.bf16.mxu0 0
    %145 = vmatpush1.bf16.msra.mxu0 0
    %146 = vmatprep.subr.bf16.mxu0 0
    %147 = vmatpush1.bf16.msra.mxu0 0
    %148 = vmatprep.subr.bf16.mxu0 0
    %149 = vmatpush1.bf16.msra.mxu0 0
    %150 = vmatprep.subr.bf16.mxu0 0
    %151 = vmatpush1.bf16.msra.mxu0 0
    %152 = vmatprep.mubr.bf16.mxu0 0
    %153 = vmatmul.mubr.bf16.gmra.mrb[0].mxu0 %v70
    %v154 = vpop.f32.mrb[0].mxu0
    %v155 = vadd.f32 %v64, %v154
    %v156 = vpop.f32.mrb[0].mxu0
    %v157 = vpop.f32.mrb[0].mxu0
    %v158 = vadd.f32 %v64, %v157
    %v159 = vpop.f32.mrb[0].mxu0
    %160 = vdwg.mxu0
    %v161 = vmul.f32 %v155, 0.5
    %v162 = vmul.f32 %v158, 0.5
    %v163 = vmul.f32 %v155, 0.70710677
    %v164 = vmul.f32 %v158, 0.70710677
    %v165 = verf.f32.pop %v163
    %v166 = verf.f32.pop %v164
    %v167 = vadd.f32 %v165, 1.0
    %v168 = vadd.f32 %v166, 1.0
    %v169 = vmul.f32 %v161, %v167
    %v170 = vmul.f32 %v162, %v168
    %v171 = vld [vmem:[%s5] sm:$0xff]
    %v172 = vld [vmem:[%s5 + $0x8] sm:$0xff]
    %v173 = vpack.c.bf16 %v170, %v169
    %v174 = vld [vmem:[%s3] sm:$0xf]
    %v175 = vld [vmem:[%s3 + $0x4] sm:$0xf]
    %v176 = vld [vmem:[%s3 + $0x8] sm:$0xf]
    %v177 = vld [vmem:[%s3 + $0xc] sm:$0xf]
    %v178 = vld [vmem:[%s3 + $0x10] sm:$0xf]
    %v179 = vld [vmem:[%s3 + $0x14] sm:$0xf]
    %v180 = vld [vmem:[%s3 + $0x18] sm:$0xf]
    %v181 = vld [vmem:[%s3 + $0x1c] sm:$0xf]
    %v182 = vld [vmem:[%s3 + $0x20] sm:$0xf]
    %v183 = vld [vmem:[%s3 + $0x24] sm:$0xf]
    %v184 = vld [vmem:[%s3 + $0x28] sm:$0xf]
    %v185 = vld [vmem:[%s3 + $0x2c] sm:$0xf]
    %v186 = vld [vmem:[%s3 + $0x30] sm:$0xf]
    %v187 = vld [vmem:[%s3 + $0x34] sm:$0xf]
    %v188 = vld [vmem:[%s3 + $0x38] sm:$0xf]
    %v189 = vld [vmem:[%s3 + $0x3c] sm:$0xf]
    %v206 = vunpack.c.l.b16 %v174
    %v207 = vunpack.c.l.b16 %v175
    %v208 = vunpack.c.l.b16 %v176
    %v209 = vunpack.c.l.b16 %v177
    %v210 = vunpack.c.l.b16 %v178
    %v211 = vunpack.c.l.b16 %v179
    %v212 = vunpack.c.l.b16 %v180
    %v213 = vunpack.c.l.b16 %v181
    %v214 = vunpack.c.l.b16 %v182
    %v215 = vunpack.c.l.b16 %v183
    %v216 = vunpack.c.l.b16 %v184
    %v217 = vunpack.c.l.b16 %v185
    %v218 = vunpack.c.l.b16 %v186
    %v219 = vunpack.c.l.b16 %v187
    %v220 = vunpack.c.l.b16 %v188
    %v221 = vunpack.c.l.b16 %v189
    %v222 = vpack.c.b16 %v207, %v206
    %v223 = vpack.c.b16 %v209, %v208
    %v224 = vpack.c.b16 %v211, %v210
    %v225 = vpack.c.b16 %v213, %v212
    %v226 = vpack.c.b16 %v215, %v214
    %v227 = vpack.c.b16 %v217, %v216
    %v228 = vpack.c.b16 %v219, %v218
    %v229 = vpack.c.b16 %v221, %v220
    %238 = vmatprep.subr.bf16.mxu0 0
    %239 = vmatpush1.bf16.msra.mxu0 %v222
    %240 = vmatprep.subr.bf16.mxu0 0
    %241 = vmatpush1.bf16.msra.mxu0 %v223
    %242 = vmatprep.subr.bf16.mxu0 0
    %243 = vmatpush1.bf16.msra.mxu0 %v224
    %244 = vmatprep.subr.bf16.mxu0 0
    %245 = vmatpush1.bf16.msra.mxu0 %v225
    %246 = vmatprep.subr.bf16.mxu0 0
    %247 = vmatpush1.bf16.msra.mxu0 %v226
    %248 = vmatprep.subr.bf16.mxu0 0
    %249 = vmatpush1.bf16.msra.mxu0 %v227
    %250 = vmatprep.subr.bf16.mxu0 0
    %251 = vmatpush1.bf16.msra.mxu0 %v228
    %252 = vmatprep.subr.bf16.mxu0 0
    %253 = vmatpush1.bf16.msra.mxu0 %v229
    %254 = vmatprep.subr.bf16.mxu0 0
    %255 = vmatpush1.bf16.msra.mxu0 0
    %256 = vmatprep.subr.bf16.mxu0 0
    %257 = vmatpush1.bf16.msra.mxu0 0
    %258 = vmatprep.subr.bf16.mxu0 0
    %259 = vmatpush1.bf16.msra.mxu0 0
    %260 = vmatprep.subr.bf16.mxu0 0
    %261 = vmatpush1.bf16.msra.mxu0 0
    %262 = vmatprep.subr.bf16.mxu0 0
    %263 = vmatpush1.bf16.msra.mxu0 0
    %264 = vmatprep.subr.bf16.mxu0 0
    %265 = vmatpush1.bf16.msra.mxu0 0
    %266 = vmatprep.subr.bf16.mxu0 0
    %267 = vmatpush1.bf16.msra.mxu0 0
    %268 = vmatprep.subr.bf16.mxu0 0
    %269 = vmatpush1.bf16.msra.mxu0 0
    %270 = vmatprep.mubr.bf16.mxu0 0
    %271 = vmatmul.mubr.bf16.gmra.mrb[0].mxu0 %v173
    %v272 = vpop.f32.mrb[0].mxu0
    %v273 = vadd.f32 0.0, %v272
    %v274 = vpop.f32.mrb[0].mxu0
    %v275 = vpop.f32.mrb[0].mxu0
    %v276 = vadd.f32 0.0, %v275
    %v277 = vpop.f32.mrb[0].mxu0
    %278 = vdwg.mxu0
    %v279 = vadd.f32 %v171, %v273
    %v280 = vadd.f32 %v172, %v276
    %281 = vst [vmem:[%s5] sm:$0xff] %v279
    %282 = vst [vmem:[%s5 + $0x8] sm:$0xff] %v280
    // Predicated region
    $region30: #{fwd.1} parent=1 // pred_check
      %p283 = pneg %p35
    $region31: #{fwd.1} parent=1 // pred_check_branch
      %285 = sbr.rel (%p283) target = $region33
    $region32: #{fwd.1} parent=1 // pred_region
      %v286 = vld [vmem:[%s5] sm:$0xff]
      %v287 = vld [vmem:[%s5 + $0x8] sm:$0xff]
      %v288 = vld [vmem:[%s4] sm:$0x1]
      %v290 = vlaneseq
      %v291 = vshrl.u32 %v290, 7
      %v292 = vsub.s32 0, %v291
      %v293 = vrot.slane %v288, %v292
      %v295 = vadd.f32 %v286, %v293
      %v296 = vadd.f32 %v287, %v293
      %297 = vst [vmem:[%s5] sm:$0xff] %v295
      %298 = vst [vmem:[%s5 + $0x8] sm:$0xff] %v296
    $region33: #{fwd.1} parent=1 // pred_fallthru
      _
    // Predicated region
    $region34: #{fwd.1} parent=1 // pred_check
      _
    $region35: #{fwd.1} parent=1 // pred_check_branch
      %300 = sbr.rel (0) target = $region37
    $region36: #{fwd.1} parent=1 // pred_region
      _
    $region37: #{fwd.1} parent=1 // pred_fallthru
      _
    // Predicated region
    $region38: #{fwd.1} parent=1 // pred_check
      _
    $region39: #{fwd.1} parent=1 // pred_check_branch
      %302 = sbr.rel (0) target = $region41
    $region40: #{fwd.1} parent=1 // pred_region
      _
    $region41: #{fwd.1} parent=1 // pred_fallthru
      _
    %303 = vsyncpa [#allocation3], 1

</llo_original>
